<compile_context>
chip_gen: v7x
topology: tpu7x:2x2x1
jax: 0.10.0
libtpu: 0.0.40
codegen_flags: <defaults>
</compile_context>

<pallas_src>
import functools

import jax
import jax.numpy as jnp
from jax.experimental import pallas as pl


# ----------------------------------------------------------------------------
# Kernel 1: fused forward (encoder stand-in + all heads, one pallas_call).
# ----------------------------------------------------------------------------
def fused_forward_kernel(x_ref, w_enc_ref, b_enc_ref, w_all_ref, b_all_ref,
                         out_ref):
    # x_ref:     (B, C, H*W)   lane-dense spatial axis
    # w_enc_ref: (C, F)
    # b_enc_ref: (1, F)
    # w_all_ref: (F, N_pad)    all heads' weights concatenated, zero padded
    # b_all_ref: (1, N_pad)
    # out_ref:   (B, N_pad)    lane-dense output slab
    pooled = jnp.mean(x_ref[...], axis=-1)                              # (B, C)
    feat = jnp.dot(pooled, w_enc_ref[...],
                   preferred_element_type=jnp.float32) + b_enc_ref[...]  # (B, F)
    acc = jnp.dot(feat, w_all_ref[...],
                  preferred_element_type=jnp.float32) + b_all_ref[...]   # (B, N_pad)
    out_ref[...] = acc.astype(out_ref.dtype)


def forward(x, params, num_heads, cls):
    """ModelEMA.forward == wrapped-module forward."""
    B, C, H, W = x.shape
    x2d = x.reshape(B, C, H * W)            # lane-dense last dim (H*W = 256)
    F = params["w_enc"].shape[1]
    n_pad = params["w_all"].shape[1]
    out = pl.pallas_call(
        fused_forward_kernel,
        out_shape=jax.ShapeDtypeStruct((B, n_pad), jnp.float32),
        in_specs=[
            pl.BlockSpec((B, C, H * W), lambda: (0, 0, 0)),
            pl.BlockSpec((C, F), lambda: (0, 0)),
            pl.BlockSpec((1, F), lambda: (0, 0)),
            pl.BlockSpec((F, n_pad), lambda: (0, 0)),
            pl.BlockSpec((1, n_pad), lambda: (0, 0)),
        ],
        out_specs=pl.BlockSpec((B, n_pad), lambda: (0, 0)),
    )(x2d, params["w_enc"], params["b_enc"], params["w_all"], params["b_all"])
    # Slice off the lane padding and restack to (num_heads, B, cls); this
    # matches torch.stack(res) and is free layout plumbing in the wrapper.
    out = out[:, : num_heads * cls].reshape(B, num_heads, cls)
    return jnp.transpose(out, (1, 0, 2))


# ----------------------------------------------------------------------------
# Kernel 2: EMA parameter update (ModelEMA.update_parameters).
#           ema <- decay * ema + (1 - decay) * model, applied per leaf.
# ----------------------------------------------------------------------------
def _ema_kernel(ema_ref, model_ref, out_ref, *, decay):
    out_ref[...] = (decay * ema_ref[...]
                    + (1.0 - decay) * model_ref[...]).astype(out_ref.dtype)


def ema_update_leaf(ema_v, model_v, decay):
    ndim = ema_v.ndim
    return pl.pallas_call(
        functools.partial(_ema_kernel, decay=decay),
        out_shape=jax.ShapeDtypeStruct(ema_v.shape, ema_v.dtype),
        in_specs=[pl.BlockSpec(ema_v.shape, lambda: (0,) * ndim),
                  pl.BlockSpec(model_v.shape, lambda: (0,) * ndim)],
        out_specs=pl.BlockSpec(ema_v.shape, lambda: (0,) * ndim),
    )(ema_v, model_v)


def update_parameters(ema_params, model_params, decay=0.9999):
    # TODO(synk): PyTorch also copies buffers verbatim; with immutable JAX
    # arrays that is just passing the new buffer through (no kernel needed).
    return jax.tree_util.tree_map(
        lambda e, m: ema_update_leaf(e, m, decay), ema_params, model_params)


# ----------------------------------------------------------------------------
# Deterministic parameter construction (synthetic, per the module's shapes).
# nn.Linear(num_feat, cls) -> weight (cls, num_feat), bias (cls,)
# Heads are packed into one fused, lane-padded (F, N_pad) weight / (1, N_pad)
# bias so the forward is a single MXU matmul with an unmasked store.
# ----------------------------------------------------------------------------
def _round_up(n, m):
    return (n + m - 1) // m * m


def init_params(key, c_in, num_feat, num_classes):
    k_enc_w, k_enc_b, k_h = jax.random.split(key, 3)
    w_enc = 0.02 * jax.random.normal(k_enc_w, (c_in, num_feat), jnp.float32)
    b_enc = 0.02 * jax.random.normal(k_enc_b, (1, num_feat), jnp.float32)

    head_keys = jax.random.split(k_h, 2 * len(num_classes))
    w_cols, b_cols = [], []
    for i, cls in enumerate(num_classes):
        w_i = 0.02 * jax.random.normal(head_keys[2 * i],
                                       (cls, num_feat), jnp.float32)
        b_i = 0.02 * jax.random.normal(head_keys[2 * i + 1],
                                       (cls,), jnp.float32)
        w_cols.append(w_i.T)            # (num_feat, cls)
        b_cols.append(b_i)              # (cls,)

    n_out = sum(num_classes)
    n_pad = _round_up(max(n_out, 1), 128)
    w_all = jnp.concatenate(w_cols, axis=1)            # (num_feat, n_out)
    b_all = jnp.concatenate(b_cols, axis=0)[None, :]   # (1, n_out)
    w_all = jnp.pad(w_all, ((0, 0), (0, n_pad - n_out)))
    b_all = jnp.pad(b_all, ((0, 0), (0, n_pad - n_out)))
    return {"w_enc": w_enc, "b_enc": b_enc, "w_all": w_all, "b_all": b_all}


if __name__ == "__main__":
    B, C_in, H, W = 2, 4, 16, 16
    num_feat = 1536
    # torch.stack in the wrapped model requires equal head widths.
    num_classes = [3, 3, 3, 3, 3]
    num_heads, cls = len(num_classes), num_classes[0]

    key = jax.random.PRNGKey(0)
    k_x, k_p, k_m = jax.random.split(key, 3)
    x = jax.random.normal(k_x, (B, C_in, H, W), jnp.float32)   # NCHW
    ema_params = init_params(k_p, C_in, num_feat, num_classes)

    # --- forward (ModelEMA.forward == wrapped module forward) --------------
    out = forward(x, ema_params, num_heads, cls)
    out = jax.block_until_ready(out)

    pooled = jnp.mean(x, axis=(2, 3))
    feat_ref = pooled @ ema_params["w_enc"] + ema_params["b_enc"]
    n_out = num_heads * cls
    heads_ref = (feat_ref @ ema_params["w_all"][:, :n_out]
                 + ema_params["b_all"][:, :n_out])
    ref = jnp.transpose(heads_ref.reshape(B, num_heads, cls), (1, 0, 2))
    assert out.shape == (num_heads, B, cls), out.shape
    assert jnp.allclose(out, ref, atol=1e-4, rtol=1e-4), "forward mismatch"

    # --- EMA parameter update (ModelEMA.update_parameters) -----------------
    decay = 0.9999
    model_params = init_params(k_m, C_in, num_feat, num_classes)
    new_ema = update_parameters(ema_params, model_params, decay)
    new_ema = jax.block_until_ready(new_ema)
    for name in ema_params:
        ref_v = decay * ema_params[name] + (1.0 - decay) * model_params[name]
        assert jnp.allclose(new_ema[name], ref_v, atol=1e-6, rtol=1e-6), name

    print("KERNEL_OK")
</pallas_src>

<mosaic_0001>
module attributes {stable_mosaic.version = 11 : i64} {
  func.func @fused_forward_kernel(%arg0: memref<2x4x256xf32, #tpu.memory_space<vmem>>, %arg1: memref<4x1536xf32, #tpu.memory_space<vmem>>, %arg2: memref<1x1536xf32, #tpu.memory_space<vmem>>, %arg3: memref<1536x128xf32, #tpu.memory_space<vmem>>, %arg4: memref<1x128xf32, #tpu.memory_space<vmem>>, %arg5: memref<2x128xf32, #tpu.memory_space<vmem>>) attributes {dimension_semantics = [], scalar_prefetch = 0 : i64, scratch_operands = 0 : i64, tpu.core_type = #tpu.core_type<tc>} {
    %c0 = arith.constant 0 : index
    %c0_0 = arith.constant 0 : index
    %c0_1 = arith.constant 0 : index
    %0 = vector.load %arg0[%c0, %c0_0, %c0_1] : memref<2x4x256xf32, #tpu.memory_space<vmem>>, vector<2x4x256xf32>
    %cst = arith.constant dense<0.000000e+00> : vector<2x4xf32>
    %1 = vector.multi_reduction <add>, %0, %cst [2] : vector<2x4x256xf32> to vector<2x4xf32>
    %cst_2 = arith.constant 2.560000e+02 : f32
    %2 = vector.broadcast %cst_2 : f32 to vector<2x4xf32>
    %3 = arith.divf %1, %2 : vector<2x4xf32>
    %c0_3 = arith.constant 0 : index
    %c0_4 = arith.constant 0 : index
    %4 = vector.load %arg1[%c0_3, %c0_4] : memref<4x1536xf32, #tpu.memory_space<vmem>>, vector<4x1536xf32>
    %cst_5 = arith.constant dense<0.000000e+00> : vector<2x1536xf32>
    %5 = tpu.matmul %3, %4, %cst_5 {dimension_numbers = #tpu.dot_dimension_numbers<[1], [0], [0], [1], [0, 0, 1, 1], [], []>} : vector<2x4xf32>, vector<4x1536xf32>, vector<2x1536xf32> -> vector<2x1536xf32>
    %c0_6 = arith.constant 0 : index
    %c0_7 = arith.constant 0 : index
    %6 = vector.load %arg2[%c0_6, %c0_7] : memref<1x1536xf32, #tpu.memory_space<vmem>>, vector<1x1536xf32>
    %7 = vector.broadcast %6 : vector<1x1536xf32> to vector<2x1536xf32>
    %8 = arith.addf %5, %7 : vector<2x1536xf32>
    %c0_8 = arith.constant 0 : index
    %c0_9 = arith.constant 0 : index
    %9 = vector.load %arg3[%c0_8, %c0_9] : memref<1536x128xf32, #tpu.memory_space<vmem>>, vector<1536x128xf32>
    %cst_10 = arith.constant dense<0.000000e+00> : vector<2x128xf32>
    %10 = tpu.matmul %8, %9, %cst_10 {dimension_numbers = #tpu.dot_dimension_numbers<[1], [0], [0], [1], [0, 0, 1, 1], [], []>} : vector<2x1536xf32>, vector<1536x128xf32>, vector<2x128xf32> -> vector<2x128xf32>
    %c0_11 = arith.constant 0 : index
    %c0_12 = arith.constant 0 : index
    %11 = vector.load %arg4[%c0_11, %c0_12] : memref<1x128xf32, #tpu.memory_space<vmem>>, vector<1x128xf32>
    %12 = vector.broadcast %11 : vector<1x128xf32> to vector<2x128xf32>
    %13 = arith.addf %10, %12 : vector<2x128xf32>
    %c0_13 = arith.constant 0 : index
    %c0_14 = arith.constant 0 : index
    %14 = vector.load %arg5[%c0_13, %c0_14] : memref<2x128xf32, #tpu.memory_space<vmem>>, vector<2x128xf32>
    tpu.vector_store %arg5[%c0_13, %c0_14], %13 {strides = array<i32>} : memref<2x128xf32, #tpu.memory_space<vmem>>, vector<2x128xf32>,
    return
  }
}

</mosaic_0001>

<llo_original>
// kernel: tpu_custom_call.1
$region0: #{tpu_custom_call.1}
  #allocation0 [shape = 'u32[]', space=smem, size = 0x4, offset = 0x4, fixed_abs, tag = 'smem constant byte address 0x4 - core index']
  #allocation1 [shape = 'u32[144,128]{1,0:T(1,128)}', space=vmem, size = 0x12000, scoped, tag = 'internal scratch']
  %s0 = inlined_call_operand.hbm [shape: f32[2,4,256], index: 0, kind: input, shape index: {}]
  %s1 = inlined_call_operand.hbm [shape: f32[4,1536], index: 1, kind: input, shape index: {}]
  %s2 = inlined_call_operand.hbm [shape: f32[1,1536], index: 2, kind: input, shape index: {}]
  %s3 = inlined_call_operand.hbm [shape: f32[1536,128], index: 3, kind: input, shape index: {}]
  %s4 = inlined_call_operand.vmem [shape: f32[1,128], index: 4, kind: input, shape index: {}]
  %s5 = inlined_call_operand.hbm [shape: f32[2,128], index: 5, kind: output, shape index: {}]
  %s6 = sld [smem:[#allocation0]]
  $region46: #{tpu_custom_call.1} parent=0
    _
  %s8 = ssub.s32 1, %s6
  %s9 = scalar_select 0, %s8, %s6
  $region1: #{tpu_custom_call.1} parent=0
    #allocation2 [shape = 'u8[8192]{0}', space=vmem, size = 0x2000, scoped, tag = 'input window, operand 0, single buffered']
    #allocation3 [shape = 's32[1]{0}', space=sflag, size = 0x4, scoped, tag = 'scoped memory for tpu_custom_call.1']
    #allocation4 [shape = 's32[1]{0}', space=sflag, size = 0x4, scoped, tag = 'scoped memory for tpu_custom_call.1']
    #allocation5 [shape = 'u8[24576]{0}', space=vmem, size = 0x6000, scoped, tag = 'input window, operand 1, single buffered']
    #allocation6 [shape = 's32[1]{0}', space=sflag, size = 0x4, scoped, tag = 'scoped memory for tpu_custom_call.1']
    #allocation7 [shape = 'u8[6144]{0}', space=vmem, size = 0x1800, scoped, tag = 'input window, operand 2, single buffered']
    #allocation8 [shape = 'u8[786432]{0}', space=vmem, size = 0xc0000, scoped, tag = 'input window, operand 3, single buffered']
    #allocation9 [shape = 's32[1]{0}', space=sflag, size = 0x4, scoped, tag = 'scoped memory for tpu_custom_call.1']
    #allocation10 [shape = 'u8[1024]{0}', space=vmem, size = 0x400, scoped, tag = 'output window, operand 0, single buffered']
    %10 = vsyncpa [#allocation3], 0
    %11 = vsyncpa [#allocation6], 0
    %12 = vsyncpa [#allocation9], 0
    %13 = vsyncpa [#allocation4], 0
    // Predicated region
    $region2: #{tpu_custom_call.1} parent=1 // pred_check
      _
    $region3: #{tpu_custom_call.1} parent=1 // pred_check_branch
      %15 = sbr.rel (0) target = $region5
    $region4: #{tpu_custom_call.1} parent=1 // pred_region
      %s17 = ssub.s32 256, 256
      %18 = vsyncadd [#allocation3], %s17
      %s19 = sshll.u32 [#allocation2], 4
      %s20 = int_to_ptr.vmem [resolvable:$true] %s19
      %25 = dma.hbm_to_vmem [thread:$0]  %s0, 256, %s20, [#allocation3], 128, 128, 8
    $region5: #{tpu_custom_call.1} parent=1 // pred_fallthru
      _
    // Predicated region
    $region6: #{tpu_custom_call.1} parent=1 // pred_check
      _
    $region7: #{tpu_custom_call.1} parent=1 // pred_check_branch
      %27 = sbr.rel (0) target = $region9
    $region8: #{tpu_custom_call.1} parent=1 // pred_region
      %s29 = ssub.s32 768, 768
      %30 = vsyncadd [#allocation6], %s29
      %s32 = sshll.u32 [#allocation5], 4
      %s33 = int_to_ptr.vmem [resolvable:$true] %s32
      %35 = dma.hbm_to_vmem [thread:$0]  %s1, 768, %s33, [#allocation6]
    $region9: #{tpu_custom_call.1} parent=1 // pred_fallthru
      _
    // Predicated region
    $region10: #{tpu_custom_call.1} parent=1 // pred_check
      _
    $region11: #{tpu_custom_call.1} parent=1 // pred_check_branch
      %37 = sbr.rel (0) target = $region13
    $region12: #{tpu_custom_call.1} parent=1 // pred_region
      %s39 = ssub.s32 192, 192
      %40 = vsyncadd [#allocation6], %s39
      %s42 = sshll.u32 [#allocation7], 4
      %s43 = int_to_ptr.vmem [resolvable:$true] %s42
      %45 = dma.hbm_to_vmem [thread:$0]  %s2, 192, %s43, [#allocation6]
    $region13: #{tpu_custom_call.1} parent=1 // pred_fallthru
      _
    // Predicated region
    $region14: #{tpu_custom_call.1} parent=1 // pred_check
      _
    $region15: #{tpu_custom_call.1} parent=1 // pred_check_branch
      %47 = sbr.rel (0) target = $region17
    $region16: #{tpu_custom_call.1} parent=1 // pred_region
      %s49 = ssub.s32 24576, 24576
      %50 = vsyncadd [#allocation9], %s49
      %s51 = sshll.u32 [#allocation8], 4
      %s52 = int_to_ptr.vmem [resolvable:$true] %s51
      %57 = dma.hbm_to_vmem [thread:$0]  %s3, 24576, %s52, [#allocation9], 128, 128, 8
    $region17: #{tpu_custom_call.1} parent=1 // pred_fallthru
      _
    // Predicated region
    $region18: #{tpu_custom_call.1} parent=1 // pred_check
      _
    $region19: #{tpu_custom_call.1} parent=1 // pred_check_branch
      %59 = sbr.rel (0) target = $region21
    $region20: #{tpu_custom_call.1} parent=1 // pred_region
      _
    $region21: #{tpu_custom_call.1} parent=1 // pred_fallthru
      _
    // Predicated region
    $region22: #{tpu_custom_call.1} parent=1 // pred_check
      _
    $region23: #{tpu_custom_call.1} parent=1 // pred_check_branch
      %61 = sbr.rel (0) target = $region25
    $region24: #{tpu_custom_call.1} parent=1 // pred_region
      %62 = dma.done [#allocation3], 256
    $region25: #{tpu_custom_call.1} parent=1 // pred_fallthru
      _
    // Predicated region
    $region26: #{tpu_custom_call.1} parent=1 // pred_check
      _
    $region27: #{tpu_custom_call.1} parent=1 // pred_check_branch
      %64 = sbr.rel (0) target = $region29
    $region28: #{tpu_custom_call.1} parent=1 // pred_region
      %65 = dma.done [#allocation6], 768
    $region29: #{tpu_custom_call.1} parent=1 // pred_fallthru
      _
    // Predicated region
    $region30: #{tpu_custom_call.1} parent=1 // pred_check
      _
    $region31: #{tpu_custom_call.1} parent=1 // pred_check_branch
      %67 = sbr.rel (0) target = $region33
    $region32: #{tpu_custom_call.1} parent=1 // pred_region
      %68 = dma.done [#allocation6], 192
    $region33: #{tpu_custom_call.1} parent=1 // pred_fallthru
      _
    // Predicated region
    $region34: #{tpu_custom_call.1} parent=1 // pred_check
      _
    $region35: #{tpu_custom_call.1} parent=1 // pred_check_branch
      %70 = sbr.rel (0) target = $region37
    $region36: #{tpu_custom_call.1} parent=1 // pred_region
      %71 = dma.done [#allocation9], 24576
    $region37: #{tpu_custom_call.1} parent=1 // pred_fallthru
      _
    %v72 = vld [vmem:[#allocation2] sm:$0xff]
    %v73 = vld [vmem:[#allocation2 + $0x8] sm:$0xff]
    %v76 = vcombine.high %v72, %v72
    %v77 = vcombine.high %v73, %v73
    %vm80 = vcmask 1043456
    %v81 = vsel %vm80, %v72, 0.0
    %v82 = vsel %vm80, %v76, 0.0
    %v83 = vadd.f32 %v81, %v82
    %84 = vadd.xlane.f32.xlu0 %v83
    %v85 = vpop.xlane.xlu0 %84
    %v86 = vsel %vm80, %v73, 0.0
    %v87 = vsel %vm80, %v77, 0.0
    %v88 = vadd.f32 %v86, %v87
    %89 = vadd.xlane.f32.xlu0 %v88
    %v90 = vpop.xlane.xlu0 %89
    %v91 = vrcp.pop 256.0
    %v92 = vmul.f32 %v85, %v91
    %v93 = vmul.f32 %v90, %v91
    %v94 = vld [vmem:[#allocation5] sm:$0xff]
    %v95 = vld [vmem:[#allocation5 + $0x8] sm:$0xff]
    %v96 = vld [vmem:[#allocation5 + $0x10] sm:$0xff]
    %v97 = vld [vmem:[#allocation5 + $0x18] sm:$0xff]
    %v98 = vld [vmem:[#allocation5 + $0x20] sm:$0xff]
    %v99 = vld [vmem:[#allocation5 + $0x28] sm:$0xff]
    %v100 = vld [vmem:[#allocation7] sm:$0xff]
    %v101 = vld [vmem:[#allocation7 + $0x8] sm:$0xf]
    %v104 = vlaneseq
    %v105 = vshrl.u32 %v104, 7
    %v106 = vsub.s32 0, %v105
    %v107 = vrot.slane %v100, %v106
    %v108 = vlaneseq
    %v109 = vshrl.u32 %v108, 7
    %v110 = vsub.s32 1, %v109
    %v111 = vrot.slane %v100, %v110
    %v112 = vlaneseq
    %v113 = vshrl.u32 %v112, 7
    %v114 = vsub.s32 2, %v113
    %v115 = vrot.slane %v100, %v114
    %v116 = vlaneseq
    %v117 = vshrl.u32 %v116, 7
    %v118 = vsub.s32 3, %v117
    %v119 = vrot.slane %v100, %v118
    %v120 = vlaneseq
    %v121 = vshrl.u32 %v120, 7
    %v122 = vsub.s32 4, %v121
    %v123 = vrot.slane %v100, %v122
    %v124 = vlaneseq
    %v125 = vshrl.u32 %v124, 7
    %v126 = vsub.s32 5, %v125
    %v127 = vrot.slane %v100, %v126
    %v128 = vlaneseq
    %v129 = vshrl.u32 %v128, 7
    %v130 = vsub.s32 6, %v129
    %v131 = vrot.slane %v100, %v130
    %v132 = vlaneseq
    %v133 = vshrl.u32 %v132, 7
    %v134 = vsub.s32 7, %v133
    %v135 = vrot.slane %v100, %v134
    %v136 = vlaneseq
    %v137 = vshrl.u32 %v136, 7
    %v138 = vsub.s32 0, %v137
    %v139 = vrot.slane %v101, %v138
    %v140 = vlaneseq
    %v141 = vshrl.u32 %v140, 7
    %v142 = vsub.s32 1, %v141
    %v143 = vrot.slane %v101, %v142
    %v144 = vlaneseq
    %v145 = vshrl.u32 %v144, 7
    %v146 = vsub.s32 2, %v145
    %v147 = vrot.slane %v101, %v146
    %v148 = vlaneseq
    %v149 = vshrl.u32 %v148, 7
    %v150 = vsub.s32 3, %v149
    %v151 = vrot.slane %v101, %v150
    %v166 = vlaneseq
    %v167 = vand.u32 %v166, 127
    %v168 = vlaneseq
    %v169 = vshrl.u32 %v168, 7
    %v170 = vsub.s32 %v167, %v169
    %v171 = vrot.slane %v92, %v170
    %v172 = vlaneseq
    %v173 = vshrl.u32 %v172, 7
    %v174 = vsub.s32 %v167, %v173
    %v175 = vrot.slane %v93, %v174
    %vm176 = vcmask 1041409
    %v177 = vsel %vm176, %v175, %v171
    %v184 = vcombine.high %v94, %v94
    %v185 = vcombine.high %v95, %v95
    %v186 = vcombine.high %v96, %v96
    %v187 = vcombine.high %v97, %v97
    %v188 = vcombine.high %v98, %v98
    %v189 = vcombine.high %v99, %v99
    %vm190 = vcmask 31744
    %v191 = vsel %vm190, %v177, 0
    %v193 = vsel %vm80, %v94, 0
    %v195 = vsel %vm80, %v184, 0
    %v197 = vsel %vm80, %v95, 0
    %v199 = vsel %vm80, %v185, 0
    %v201 = vsel %vm80, %v96, 0
    %v203 = vsel %vm80, %v186, 0
    %v205 = vsel %vm80, %v97, 0
    %v207 = vsel %vm80, %v187, 0
    %v209 = vsel %vm80, %v98, 0
    %v211 = vsel %vm80, %v188, 0
    %v213 = vsel %vm80, %v99, 0
    %v215 = vsel %vm80, %v189, 0
    %217 = vmatprep.subr.mxu0 %v195
    %218 = vmatpush1.msra.mxu0 %v193
    %219 = vmatprep.subr.mxu0 0.0
    %220 = vmatpush1.msra.mxu0 0.0
    %221 = vmatprep.subr.mxu0 0.0
    %222 = vmatpush1.msra.mxu0 0.0
    %223 = vmatprep.subr.mxu0 0.0
    %224 = vmatpush1.msra.mxu0 0.0
    %225 = vmatprep.subr.mxu0 0.0
    %226 = vmatpush1.msra.mxu0 0.0
    %227 = vmatprep.subr.mxu0 0.0
    %228 = vmatpush1.msra.mxu0 0.0
    %229 = vmatprep.subr.mxu0 0.0
    %230 = vmatpush1.msra.mxu0 0.0
    %231 = vmatprep.subr.mxu0 0.0
    %232 = vmatpush1.msra.mxu0 0.0
    %233 = vmatprep.subr.mxu0 0.0
    %234 = vmatpush1.msra.mxu0 0.0
    %235 = vmatprep.subr.mxu0 0.0
    %236 = vmatpush1.msra.mxu0 0.0
    %237 = vmatprep.subr.mxu0 0.0
    %238 = vmatpush1.msra.mxu0 0.0
    %239 = vmatprep.subr.mxu0 0.0
    %240 = vmatpush1.msra.mxu0 0.0
    %241 = vmatprep.subr.mxu0 0.0
    %242 = vmatpush1.msra.mxu0 0.0
    %243 = vmatprep.subr.mxu0 0.0
    %244 = vmatpush1.msra.mxu0 0.0
    %245 = vmatprep.subr.mxu0 0.0
    %246 = vmatpush1.msra.mxu0 0.0
    %247 = vmatprep.subr.mxu0 0.0
    %248 = vmatpush1.msra.mxu0 0.0
    %249 = vmatprep.subr.mxu0 0.0
    %250 = vmatpush1.msra.mxu0 0.0
    %251 = vmatprep.subr.mxu0 0.0
    %252 = vmatpush1.msra.mxu0 0.0
    %253 = vmatprep.subr.mxu0 0.0
    %254 = vmatpush1.msra.mxu0 0.0
    %255 = vmatprep.subr.mxu0 0.0
    %256 = vmatpush1.msra.mxu0 0.0
    %257 = vmatprep.subr.mxu0 0.0
    %258 = vmatpush1.msra.mxu0 0.0
    %259 = vmatprep.subr.mxu0 0.0
    %260 = vmatpush1.msra.mxu0 0.0
    %261 = vmatprep.subr.mxu0 0.0
    %262 = vmatpush1.msra.mxu0 0.0
    %263 = vmatprep.subr.mxu0 0.0
    %264 = vmatpush1.msra.mxu0 0.0
    %265 = vmatprep.subr.mxu0 0.0
    %266 = vmatpush1.msra.mxu0 0.0
    %267 = vmatprep.subr.mxu0 0.0
    %268 = vmatpush1.msra.mxu0 0.0
    %269 = vmatprep.subr.mxu0 0.0
    %270 = vmatpush1.msra.mxu0 0.0
    %271 = vmatprep.subr.mxu0 0.0
    %272 = vmatpush1.msra.mxu0 0.0
    %273 = vmatprep.subr.mxu0 0.0
    %274 = vmatpush1.msra.mxu0 0.0
    %275 = vmatprep.subr.mxu0 0.0
    %276 = vmatpush1.msra.mxu0 0.0
    %277 = vmatprep.subr.mxu0 0.0
    %278 = vmatpush1.msra.mxu0 0.0
    %279 = vmatprep.subr.mxu0 0.0
    %280 = vmatpush1.msra.mxu0 0.0
    %281 = vmatprep.mubr.f32.mxu0 0.0
    %282 = vmatmul.mubr.f32.gmra.mrb[0].mxu0 %v191
    %v283 = vpop.f32.mrb[0].mxu0
    %v284 = vadd.f32 %v107, %v283
    %v285 = vpop.f32.mrb[0].mxu0
    %v286 = vadd.f32 %v111, %v285
    %287 = vdwg.mxu0
    %288 = vmatprep.subr.mxu0 %v199
    %289 = vmatpush1.msra.mxu0 %v197
    %290 = vmatprep.subr.mxu0 0.0
    %291 = vmatpush1.msra.mxu0 0.0
    %292 = vmatprep.subr.mxu0 0.0
    %293 = vmatpush1.msra.mxu0 0.0
    %294 = vmatprep.subr.mxu0 0.0
    %295 = vmatpush1.msra.mxu0 0.0
    %296 = vmatprep.subr.mxu0 0.0
    %297 = vmatpush1.msra.mxu0 0.0
    %298 = vmatprep.subr.mxu0 0.0
    %299 = vmatpush1.msra.mxu0 0.0
    %300 = vmatprep.subr.mxu0 0.0
    %301 = vmatpush1.msra.mxu0 0.0
    %302 = vmatprep.subr.mxu0 0.0
    %303 = vmatpush1.msra.mxu0 0.0
    %304 = vmatprep.subr.mxu0 0.0
    %305 = vmatpush1.msra.mxu0 0.0
    %306 = vmatprep.subr.mxu0 0.0
    %307 = vmatpush1.msra.mxu0 0.0
    %308 = vmatprep.subr.mxu0 0.0
    %309 = vmatpush1.msra.mxu0 0.0
    %310 = vmatprep.subr.mxu0 0.0
    %311 = vmatpush1.msra.mxu0 0.0
    %312 = vmatprep.subr.mxu0 0.0
    %313 = vmatpush1.msra.mxu0 0.0
    %314 = vmatprep.subr.mxu0 0.0
    %315 = vmatpush1.msra.mxu0 0.0
    %316 = vmatprep.subr.mxu0 0.0
    %317 = vmatpush1.msra.mxu0 0.0
    %318 = vmatprep.subr.mxu0 0.0
    %319 = vmatpush1.msra.mxu0 0.0
    %320 = vmatprep.subr.mxu0 0.0
    %321 = vmatpush1.msra.mxu0 0.0
    %322 = vmatprep.subr.mxu0 0.0
    %323 = vmatpush1.msra.mxu0 0.0
    %324 = vmatprep.subr.mxu0 0.0
    %325 = vmatpush1.msra.mxu0 0.0
    %326 = vmatprep.subr.mxu0 0.0
    %327 = vmatpush1.msra.mxu0 0.0
    %328 = vmatprep.subr.mxu0 0.0
    %329 = vmatpush1.msra.mxu0 0.0
    %330 = vmatprep.subr.mxu0 0.0
    %331 = vmatpush1.msra.mxu0 0.0
    %332 = vmatprep.subr.mxu0 0.0
    %333 = vmatpush1.msra.mxu0 0.0
    %334 = vmatprep.subr.mxu0 0.0
    %335 = vmatpush1.msra.mxu0 0.0
    %336 = vmatprep.subr.mxu0 0.0
    %337 = vmatpush1.msra.mxu0 0.0
    %338 = vmatprep.subr.mxu0 0.0
    %339 = vmatpush1.msra.mxu0 0.0
    %340 = vmatprep.subr.mxu0 0.0
    %341 = vmatpush1.msra.mxu0 0.0
    %342 = vmatprep.subr.mxu0 0.0
    %343 = vmatpush1.msra.mxu0 0.0
    %344 = vmatprep.subr.mxu0 0.0
    %345 = vmatpush1.msra.mxu0 0.0
    %346 = vmatprep.subr.mxu0 0.0
    %347 = vmatpush1.msra.mxu0 0.0
    %348 = vmatprep.subr.mxu0 0.0
    %349 = vmatpush1.msra.mxu0 0.0
    %350 = vmatprep.subr.mxu0 0.0
    %351 = vmatpush1.msra.mxu0 0.0
    %352 = vmatprep.mubr.f32.mxu0 0.0
    %353 = vmatmul.mubr.f32.gmra.mrb[0].mxu0 %v191
    %v354 = vpop.f32.mrb[0].mxu0
    %v355 = vadd.f32 %v115, %v354
    %v356 = vpop.f32.mrb[0].mxu0
    %v357 = vadd.f32 %v119, %v356
    %358 = vdwg.mxu0
    %359 = vmatprep.subr.mxu0 %v203
    %360 = vmatpush1.msra.mxu0 %v201
    %361 = vmatprep.subr.mxu0 0.0
    %362 = vmatpush1.msra.mxu0 0.0
    %363 = vmatprep.subr.mxu0 0.0
    %364 = vmatpush1.msra.mxu0 0.0
    %365 = vmatprep.subr.mxu0 0.0
    %366 = vmatpush1.msra.mxu0 0.0
    %367 = vmatprep.subr.mxu0 0.0
    %368 = vmatpush1.msra.mxu0 0.0
    %369 = vmatprep.subr.mxu0 0.0
    %370 = vmatpush1.msra.mxu0 0.0
    %371 = vmatprep.subr.mxu0 0.0
    %372 = vmatpush1.msra.mxu0 0.0
    %373 = vmatprep.subr.mxu0 0.0
    %374 = vmatpush1.msra.mxu0 0.0
    %375 = vmatprep.subr.mxu0 0.0
    %376 = vmatpush1.msra.mxu0 0.0
    %377 = vmatprep.subr.mxu0 0.0
    %378 = vmatpush1.msra.mxu0 0.0
    %379 = vmatprep.subr.mxu0 0.0
    %380 = vmatpush1.msra.mxu0 0.0
    %381 = vmatprep.subr.mxu0 0.0
    %382 = vmatpush1.msra.mxu0 0.0
    %383 = vmatprep.subr.mxu0 0.0
    %384 = vmatpush1.msra.mxu0 0.0
    %385 = vmatprep.subr.mxu0 0.0
    %386 = vmatpush1.msra.mxu0 0.0
    %387 = vmatprep.subr.mxu0 0.0
    %388 = vmatpush1.msra.mxu0 0.0
    %389 = vmatprep.subr.mxu0 0.0
    %390 = vmatpush1.msra.mxu0 0.0
    %391 = vmatprep.subr.mxu0 0.0
    %392 = vmatpush1.msra.mxu0 0.0
    %393 = vmatprep.subr.mxu0 0.0
    %394 = vmatpush1.msra.mxu0 0.0
    %395 = vmatprep.subr.mxu0 0.0
    %396 = vmatpush1.msra.mxu0 0.0
    %397 = vmatprep.subr.mxu0 0.0
    %398 = vmatpush1.msra.mxu0 0.0
    %399 = vmatprep.subr.mxu0 0.0
    %400 = vmatpush1.msra.mxu0 0.0
    %401 = vmatprep.subr.mxu0 0.0
    %402 = vmatpush1.msra.mxu0 0.0
    %403 = vmatprep.subr.mxu0 0.0
    %404 = vmatpush1.msra.mxu0 0.0
    %405 = vmatprep.subr.mxu0 0.0
    %406 = vmatpush1.msra.mxu0 0.0
    %407 = vmatprep.subr.mxu0 0.0
    %408 = vmatpush1.msra.mxu0 0.0
    %409 = vmatprep.subr.mxu0 0.0
    %410 = vmatpush1.msra.mxu0 0.0
    %411 = vmatprep.subr.mxu0 0.0
    %412 = vmatpush1.msra.mxu0 0.0
    %413 = vmatprep.subr.mxu0 0.0
    %414 = vmatpush1.msra.mxu0 0.0
    %415 = vmatprep.subr.mxu0 0.0
    %416 = vmatpush1.msra.mxu0 0.0
    %417 = vmatprep.subr.mxu0 0.0
    %418 = vmatpush1.msra.mxu0 0.0
    %419 = vmatprep.subr.mxu0 0.0
    %420 = vmatpush1.msra.mxu0 0.0
    %421 = vmatprep.subr.mxu0 0.0
    %422 = vmatpush1.msra.mxu0 0.0
    %423 = vmatprep.mubr.f32.mxu0 0.0
    %424 = vmatmul.mubr.f32.gmra.mrb[0].mxu0 %v191
    %v425 = vpop.f32.mrb[0].mxu0
    %v426 = vadd.f32 %v123, %v425
    %v427 = vpop.f32.mrb[0].mxu0
    %v428 = vadd.f32 %v127, %v427
    %429 = vdwg.mxu0
    %430 = vmatprep.subr.mxu0 %v207
    %431 = vmatpush1.msra.mxu0 %v205
    %432 = vmatprep.subr.mxu0 0.0
    %433 = vmatpush1.msra.mxu0 0.0
    %434 = vmatprep.subr.mxu0 0.0
    %435 = vmatpush1.msra.mxu0 0.0
    %436 = vmatprep.subr.mxu0 0.0
    %437 = vmatpush1.msra.mxu0 0.0
    %438 = vmatprep.subr.mxu0 0.0
    %439 = vmatpush1.msra.mxu0 0.0
    %440 = vmatprep.subr.mxu0 0.0
    %441 = vmatpush1.msra.mxu0 0.0
    %442 = vmatprep.subr.mxu0 0.0
    %443 = vmatpush1.msra.mxu0 0.0
    %444 = vmatprep.subr.mxu0 0.0
    %445 = vmatpush1.msra.mxu0 0.0
    %446 = vmatprep.subr.mxu0 0.0
    %447 = vmatpush1.msra.mxu0 0.0
    %448 = vmatprep.subr.mxu0 0.0
    %449 = vmatpush1.msra.mxu0 0.0
    %450 = vmatprep.subr.mxu0 0.0
    %451 = vmatpush1.msra.mxu0 0.0
    %452 = vmatprep.subr.mxu0 0.0
    %453 = vmatpush1.msra.mxu0 0.0
    %454 = vmatprep.subr.mxu0 0.0
    %455 = vmatpush1.msra.mxu0 0.0
    %456 = vmatprep.subr.mxu0 0.0
    %457 = vmatpush1.msra.mxu0 0.0
    %458 = vmatprep.subr.mxu0 0.0
    %459 = vmatpush1.msra.mxu0 0.0
    %460 = vmatprep.subr.mxu0 0.0
    %461 = vmatpush1.msra.mxu0 0.0
    %462 = vmatprep.subr.mxu0 0.0
    %463 = vmatpush1.msra.mxu0 0.0
    %464 = vmatprep.subr.mxu0 0.0
    %465 = vmatpush1.msra.mxu0 0.0
    %466 = vmatprep.subr.mxu0 0.0
    %467 = vmatpush1.msra.mxu0 0.0
    %468 = vmatprep.subr.mxu0 0.0
    %469 = vmatpush1.msra.mxu0 0.0
    %470 = vmatprep.subr.mxu0 0.0
    %471 = vmatpush1.msra.mxu0 0.0
    %472 = vmatprep.subr.mxu0 0.0
    %473 = vmatpush1.msra.mxu0 0.0
    %474 = vmatprep.subr.mxu0 0.0
    %475 = vmatpush1.msra.mxu0 0.0
    %476 = vmatprep.subr.mxu0 0.0
    %477 = vmatpush1.msra.mxu0 0.0
    %478 = vmatprep.subr.mxu0 0.0
    %479 = vmatpush1.msra.mxu0 0.0
    %480 = vmatprep.subr.mxu0 0.0
    %481 = vmatpush1.msra.mxu0 0.0
    %482 = vmatprep.subr.mxu0 0.0
    %483 = vmatpush1.msra.mxu0 0.0
    %484 = vmatprep.subr.mxu0 0.0
    %485 = vmatpush1.msra.mxu0 0.0
    %486 = vmatprep.subr.mxu0 0.0
    %487 = vmatpush1.msra.mxu0 0.0
    %488 = vmatprep.subr.mxu0 0.0
    %489 = vmatpush1.msra.mxu0 0.0
    %490 = vmatprep.subr.mxu0 0.0
    %491 = vmatpush1.msra.mxu0 0.0
    %492 = vmatprep.subr.mxu0 0.0
    %493 = vmatpush1.msra.mxu0 0.0
    %494 = vmatprep.mubr.f32.mxu0 0.0
    %495 = vmatmul.mubr.f32.gmra.mrb[0].mxu0 %v191
    %v496 = vpop.f32.mrb[0].mxu0
    %v497 = vadd.f32 %v131, %v496
    %v498 = vpop.f32.mrb[0].mxu0
    %v499 = vadd.f32 %v135, %v498
    %500 = vdwg.mxu0
    %501 = vmatprep.subr.mxu0 %v211
    %502 = vmatpush1.msra.mxu0 %v209
    %503 = vmatprep.subr.mxu0 0.0
    %504 = vmatpush1.msra.mxu0 0.0
    %505 = vmatprep.subr.mxu0 0.0
    %506 = vmatpush1.msra.mxu0 0.0
    %507 = vmatprep.subr.mxu0 0.0
    %508 = vmatpush1.msra.mxu0 0.0
    %509 = vmatprep.subr.mxu0 0.0
    %510 = vmatpush1.msra.mxu0 0.0
    %511 = vmatprep.subr.mxu0 0.0
    %512 = vmatpush1.msra.mxu0 0.0
    %513 = vmatprep.subr.mxu0 0.0
    %514 = vmatpush1.msra.mxu0 0.0
    %515 = vmatprep.subr.mxu0 0.0
    %516 = vmatpush1.msra.mxu0 0.0
    %517 = vmatprep.subr.mxu0 0.0
    %518 = vmatpush1.msra.mxu0 0.0
    %519 = vmatprep.subr.mxu0 0.0
    %520 = vmatpush1.msra.mxu0 0.0
    %521 = vmatprep.subr.mxu0 0.0
    %522 = vmatpush1.msra.mxu0 0.0
    %523 = vmatprep.subr.mxu0 0.0
    %524 = vmatpush1.msra.mxu0 0.0
    %525 = vmatprep.subr.mxu0 0.0
    %526 = vmatpush1.msra.mxu0 0.0
    %527 = vmatprep.subr.mxu0 0.0
    %528 = vmatpush1.msra.mxu0 0.0
    %529 = vmatprep.subr.mxu0 0.0
    %530 = vmatpush1.msra.mxu0 0.0
    %531 = vmatprep.subr.mxu0 0.0
    %532 = vmatpush1.msra.mxu0 0.0
    %533 = vmatprep.subr.mxu0 0.0
    %534 = vmatpush1.msra.mxu0 0.0
    %535 = vmatprep.subr.mxu0 0.0
    %536 = vmatpush1.msra.mxu0 0.0
    %537 = vmatprep.subr.mxu0 0.0
    %538 = vmatpush1.msra.mxu0 0.0
    %539 = vmatprep.subr.mxu0 0.0
    %540 = vmatpush1.msra.mxu0 0.0
    %541 = vmatprep.subr.mxu0 0.0
    %542 = vmatpush1.msra.mxu0 0.0
    %543 = vmatprep.subr.mxu0 0.0
    %544 = vmatpush1.msra.mxu0 0.0
    %545 = vmatprep.subr.mxu0 0.0
    %546 = vmatpush1.msra.mxu0 0.0
    %547 = vmatprep.subr.mxu0 0.0
    %548 = vmatpush1.msra.mxu0 0.0
    %549 = vmatprep.subr.mxu0 0.0
    %550 = vmatpush1.msra.mxu0 0.0
    %551 = vmatprep.subr.mxu0 0.0
    %552 = vmatpush1.msra.mxu0 0.0
    %553 = vmatprep.subr.mxu0 0.0
    %554 = vmatpush1.msra.mxu0 0.0
    %555 = vmatprep.subr.mxu0 0.0
    %556 = vmatpush1.msra.mxu0 0.0
    %557 = vmatprep.subr.mxu0 0.0
    %558 = vmatpush1.msra.mxu0 0.0
    %559 = vmatprep.subr.mxu0 0.0
    %560 = vmatpush1.msra.mxu0 0.0
    %561 = vmatprep.subr.mxu0 0.0
    %562 = vmatpush1.msra.mxu0 0.0
    %563 = vmatprep.subr.mxu0 0.0
    %564 = vmatpush1.msra.mxu0 0.0
    %565 = vmatprep.mubr.f32.mxu0 0.0
    %566 = vmatmul.mubr.f32.gmra.mrb[0].mxu0 %v191
    %v567 = vpop.f32.mrb[0].mxu0
    %v568 = vadd.f32 %v139, %v567
    %v569 = vpop.f32.mrb[0].mxu0
    %v570 = vadd.f32 %v143, %v569
    %571 = vdwg.mxu0
    %572 = vmatprep.subr.mxu0 %v215
    %573 = vmatpush1.msra.mxu0 %v213
    %574 = vmatprep.subr.mxu0 0.0
    %575 = vmatpush1.msra.mxu0 0.0
    %576 = vmatprep.subr.mxu0 0.0
    %577 = vmatpush1.msra.mxu0 0.0
    %578 = vmatprep.subr.mxu0 0.0
    %579 = vmatpush1.msra.mxu0 0.0
    %580 = vmatprep.subr.mxu0 0.0
    %581 = vmatpush1.msra.mxu0 0.0
    %582 = vmatprep.subr.mxu0 0.0
    %583 = vmatpush1.msra.mxu0 0.0
    %584 = vmatprep.subr.mxu0 0.0
    %585 = vmatpush1.msra.mxu0 0.0
    %586 = vmatprep.subr.mxu0 0.0
    %587 = vmatpush1.msra.mxu0 0.0
    %588 = vmatprep.subr.mxu0 0.0
    %589 = vmatpush1.msra.mxu0 0.0
    %590 = vmatprep.subr.mxu0 0.0
    %591 = vmatpush1.msra.mxu0 0.0
    %592 = vmatprep.subr.mxu0 0.0
    %593 = vmatpush1.msra.mxu0 0.0
    %594 = vmatprep.subr.mxu0 0.0
    %595 = vmatpush1.msra.mxu0 0.0
    %596 = vmatprep.subr.mxu0 0.0
    %597 = vmatpush1.msra.mxu0 0.0
    %598 = vmatprep.subr.mxu0 0.0
    %599 = vmatpush1.msra.mxu0 0.0
    %600 = vmatprep.subr.mxu0 0.0
    %601 = vmatpush1.msra.mxu0 0.0
    %602 = vmatprep.subr.mxu0 0.0
    %603 = vmatpush1.msra.mxu0 0.0
    %604 = vmatprep.subr.mxu0 0.0
    %605 = vmatpush1.msra.mxu0 0.0
    %606 = vmatprep.subr.mxu0 0.0
    %607 = vmatpush1.msra.mxu0 0.0
    %608 = vmatprep.subr.mxu0 0.0
    %609 = vmatpush1.msra.mxu0 0.0
    %610 = vmatprep.subr.mxu0 0.0
    %611 = vmatpush1.msra.mxu0 0.0
    %612 = vmatprep.subr.mxu0 0.0
    %613 = vmatpush1.msra.mxu0 0.0
    %614 = vmatprep.subr.mxu0 0.0
    %615 = vmatpush1.msra.mxu0 0.0
    %616 = vmatprep.subr.mxu0 0.0
    %617 = vmatpush1.msra.mxu0 0.0
    %618 = vmatprep.subr.mxu0 0.0
    %619 = vmatpush1.msra.mxu0 0.0
    %620 = vmatprep.subr.mxu0 0.0
    %621 = vmatpush1.msra.mxu0 0.0
    %622 = vmatprep.subr.mxu0 0.0
    %623 = vmatpush1.msra.mxu0 0.0
    %624 = vmatprep.subr.mxu0 0.0
    %625 = vmatpush1.msra.mxu0 0.0
    %626 = vmatprep.subr.mxu0 0.0
    %627 = vmatpush1.msra.mxu0 0.0
    %628 = vmatprep.subr.mxu0 0.0
    %629 = vmatpush1.msra.mxu0 0.0
    %630 = vmatprep.subr.mxu0 0.0
    %631 = vmatpush1.msra.mxu0 0.0
    %632 = vmatprep.subr.mxu0 0.0
    %633 = vmatpush1.msra.mxu0 0.0
    %634 = vmatprep.subr.mxu0 0.0
    %635 = vmatpush1.msra.mxu0 0.0
    %636 = vmatprep.mubr.f32.mxu0 0.0
    %637 = vmatmul.mubr.f32.gmra.mrb[0].mxu0 %v191
    %v638 = vpop.f32.mrb[0].mxu0
    %v639 = vadd.f32 %v147, %v638
    %v640 = vpop.f32.mrb[0].mxu0
    %v641 = vadd.f32 %v151, %v640
    %642 = vdwg.mxu0
    %v643 = vld [vmem:[#allocation8] sm:$0xff]
    %v644 = vld [vmem:[#allocation8 + $0x8] sm:$0xff]
    %v645 = vld [vmem:[#allocation8 + $0x10] sm:$0xff]
    %v646 = vld [vmem:[#allocation8 + $0x18] sm:$0xff]
    %v647 = vld [vmem:[#allocation8 + $0x20] sm:$0xff]
    %v648 = vld [vmem:[#allocation8 + $0x28] sm:$0xff]
    %v649 = vld [vmem:[#allocation8 + $0x30] sm:$0xff]
    %v650 = vld [vmem:[#allocation8 + $0x38] sm:$0xff]
    %v651 = vld [vmem:[#allocation8 + $0x40] sm:$0xff]
    %v652 = vld [vmem:[#allocation8 + $0x48] sm:$0xff]
    %v653 = vld [vmem:[#allocation8 + $0x50] sm:$0xff]
    %v654 = vld [vmem:[#allocation8 + $0x58] sm:$0xff]
    %v655 = vld [vmem:[#allocation8 + $0x60] sm:$0xff]
    %v656 = vld [vmem:[#allocation8 + $0x68] sm:$0xff]
    %v657 = vld [vmem:[#allocation8 + $0x70] sm:$0xff]
    %v658 = vld [vmem:[#allocation8 + $0x78] sm:$0xff]
    %v659 = vld [vmem:[#allocation8 + $0x80] sm:$0xff]
    %v660 = vld [vmem:[#allocation8 + $0x88] sm:$0xff]
    %v661 = vld [vmem:[#allocation8 + $0x90] sm:$0xff]
    %v662 = vld [vmem:[#allocation8 + $0x98] sm:$0xff]
    %v663 = vld [vmem:[#allocation8 + $0xa0] sm:$0xff]
    %v664 = vld [vmem:[#allocation8 + $0xa8] sm:$0xff]
    %v665 = vld [vmem:[#allocation8 + $0xb0] sm:$0xff]
    %v666 = vld [vmem:[#allocation8 + $0xb8] sm:$0xff]
    %v667 = vld [vmem:[#allocation8 + $0xc0] sm:$0xff]
    %v668 = vld [vmem:[#allocation8 + $0xc8] sm:$0xff]
    %v669 = vld [vmem:[#allocation8 + $0xd0] sm:$0xff]
    %v670 = vld [vmem:[#allocation8 + $0xd8] sm:$0xff]
    %v671 = vld [vmem:[#allocation8 + $0xe0] sm:$0xff]
    %v672 = vld [vmem:[#allocation8 + $0xe8] sm:$0xff]
    %v673 = vld [vmem:[#allocation8 + $0xf0] sm:$0xff]
    %v674 = vld [vmem:[#allocation8 + $0xf8] sm:$0xff]
    %v675 = vld [vmem:[#allocation8 + $0x100] sm:$0xff]
    %v676 = vld [vmem:[#allocation8 + $0x108] sm:$0xff]
    %v677 = vld [vmem:[#allocation8 + $0x110] sm:$0xff]
    %v678 = vld [vmem:[#allocation8 + $0x118] sm:$0xff]
    %v679 = vld [vmem:[#allocation8 + $0x120] sm:$0xff]
    %v680 = vld [vmem:[#allocation8 + $0x128] sm:$0xff]
    %v681 = vld [vmem:[#allocation8 + $0x130] sm:$0xff]
    %v682 = vld [vmem:[#allocation8 + $0x138] sm:$0xff]
    %v683 = vld [vmem:[#allocation8 + $0x140] sm:$0xff]
    %v684 = vld [vmem:[#allocation8 + $0x148] sm:$0xff]
    %v685 = vld [vmem:[#allocation8 + $0x150] sm:$0xff]
    %v686 = vld [vmem:[#allocation8 + $0x158] sm:$0xff]
    %v687 = vld [vmem:[#allocation8 + $0x160] sm:$0xff]
    %v688 = vld [vmem:[#allocation8 + $0x168] sm:$0xff]
    %v689 = vld [vmem:[#allocation8 + $0x170] sm:$0xff]
    %v690 = vld [vmem:[#allocation8 + $0x178] sm:$0xff]
    %v691 = vld [vmem:[#allocation8 + $0x180] sm:$0xff]
    %v692 = vld [vmem:[#allocation8 + $0x188] sm:$0xff]
    %v693 = vld [vmem:[#allocation8 + $0x190] sm:$0xff]
    %v694 = vld [vmem:[#allocation8 + $0x198] sm:$0xff]
    %v695 = vld [vmem:[#allocation8 + $0x1a0] sm:$0xff]
    %v696 = vld [vmem:[#allocation8 + $0x1a8] sm:$0xff]
    %v697 = vld [vmem:[#allocation8 + $0x1b0] sm:$0xff]
    %v698 = vld [vmem:[#allocation8 + $0x1b8] sm:$0xff]
    %v699 = vld [vmem:[#allocation8 + $0x1c0] sm:$0xff]
    %v700 = vld [vmem:[#allocation8 + $0x1c8] sm:$0xff]
    %v701 = vld [vmem:[#allocation8 + $0x1d0] sm:$0xff]
    %v702 = vld [vmem:[#allocation8 + $0x1d8] sm:$0xff]
    %v703 = vld [vmem:[#allocation8 + $0x1e0] sm:$0xff]
    %v704 = vld [vmem:[#allocation8 + $0x1e8] sm:$0xff]
    %v705 = vld [vmem:[#allocation8 + $0x1f0] sm:$0xff]
    %v706 = vld [vmem:[#allocation8 + $0x1f8] sm:$0xff]
    %v707 = vld [vmem:[#allocation8 + $0x200] sm:$0xff]
    %v708 = vld [vmem:[#allocation8 + $0x208] sm:$0xff]
    %v709 = vld [vmem:[#allocation8 + $0x210] sm:$0xff]
    %v710 = vld [vmem:[#allocation8 + $0x218] sm:$0xff]
    %v711 = vld [vmem:[#allocation8 + $0x220] sm:$0xff]
    %v712 = vld [vmem:[#allocation8 + $0x228] sm:$0xff]
    %v713 = vld [vmem:[#allocation8 + $0x230] sm:$0xff]
    %v714 = vld [vmem:[#allocation8 + $0x238] sm:$0xff]
    %v715 = vld [vmem:[#allocation8 + $0x240] sm:$0xff]
    %v716 = vld [vmem:[#allocation8 + $0x248] sm:$0xff]
    %v717 = vld [vmem:[#allocation8 + $0x250] sm:$0xff]
    %v718 = vld [vmem:[#allocation8 + $0x258] sm:$0xff]
    %v719 = vld [vmem:[#allocation8 + $0x260] sm:$0xff]
    %v720 = vld [vmem:[#allocation8 + $0x268] sm:$0xff]
    %v721 = vld [vmem:[#allocation8 + $0x270] sm:$0xff]
    %v722 = vld [vmem:[#allocation8 + $0x278] sm:$0xff]
    %v723 = vld [vmem:[#allocation8 + $0x280] sm:$0xff]
    %v724 = vld [vmem:[#allocation8 + $0x288] sm:$0xff]
    %v725 = vld [vmem:[#allocation8 + $0x290] sm:$0xff]
    %v726 = vld [vmem:[#allocation8 + $0x298] sm:$0xff]
    %v727 = vld [vmem:[#allocation8 + $0x2a0] sm:$0xff]
    %v728 = vld [vmem:[#allocation8 + $0x2a8] sm:$0xff]
    %v729 = vld [vmem:[#allocation8 + $0x2b0] sm:$0xff]
    %v730 = vld [vmem:[#allocation8 + $0x2b8] sm:$0xff]
    %v731 = vld [vmem:[#allocation8 + $0x2c0] sm:$0xff]
    %v732 = vld [vmem:[#allocation8 + $0x2c8] sm:$0xff]
    %v733 = vld [vmem:[#allocation8 + $0x2d0] sm:$0xff]
    %v734 = vld [vmem:[#allocation8 + $0x2d8] sm:$0xff]
    %v735 = vld [vmem:[#allocation8 + $0x2e0] sm:$0xff]
    %v736 = vld [vmem:[#allocation8 + $0x2e8] sm:$0xff]
    %v737 = vld [vmem:[#allocation8 + $0x2f0] sm:$0xff]
    %v738 = vld [vmem:[#allocation8 + $0x2f8] sm:$0xff]
    %v739 = vld [vmem:[#allocation8 + $0x300] sm:$0xff]
    %v740 = vld [vmem:[#allocation8 + $0x308] sm:$0xff]
    %v741 = vld [vmem:[#allocation8 + $0x310] sm:$0xff]
    %v742 = vld [vmem:[#allocation8 + $0x318] sm:$0xff]
    %v743 = vld [vmem:[#allocation8 + $0x320] sm:$0xff]
    %v744 = vld [vmem:[#allocation8 + $0x328] sm:$0xff]
    %v745 = vld [vmem:[#allocation8 + $0x330] sm:$0xff]
    %v746 = vld [vmem:[#allocation8 + $0x338] sm:$0xff]
    %v747 = vld [vmem:[#allocation8 + $0x340] sm:$0xff]
    %v748 = vld [vmem:[#allocation8 + $0x348] sm:$0xff]
    %v749 = vld [vmem:[#allocation8 + $0x350] sm:$0xff]
    %v750 = vld [vmem:[#allocation8 + $0x358] sm:$0xff]
    %v751 = vld [vmem:[#allocation8 + $0x360] sm:$0xff]
    %v752 = vld [vmem:[#allocation8 + $0x368] sm:$0xff]
    %v753 = vld [vmem:[#allocation8 + $0x370] sm:$0xff]
    %v754 = vld [vmem:[#allocation8 + $0x378] sm:$0xff]
    %v755 = vld [vmem:[#allocation8 + $0x380] sm:$0xff]
    %v756 = vld [vmem:[#allocation8 + $0x388] sm:$0xff]
    %v757 = vld [vmem:[#allocation8 + $0x390] sm:$0xff]
    %v758 = vld [vmem:[#allocation8 + $0x398] sm:$0xff]
    %v759 = vld [vmem:[#allocation8 + $0x3a0] sm:$0xff]
    %v760 = vld [vmem:[#allocation8 + $0x3a8] sm:$0xff]
    %v761 = vld [vmem:[#allocation8 + $0x3b0] sm:$0xff]
    %v762 = vld [vmem:[#allocation8 + $0x3b8] sm:$0xff]
    %v763 = vld [vmem:[#allocation8 + $0x3c0] sm:$0xff]
    %v764 = vld [vmem:[#allocation8 + $0x3c8] sm:$0xff]
    %v765 = vld [vmem:[#allocation8 + $0x3d0] sm:$0xff]
    %v766 = vld [vmem:[#allocation8 + $0x3d8] sm:$0xff]
    %v767 = vld [vmem:[#allocation8 + $0x3e0] sm:$0xff]
    %v768 = vld [vmem:[#allocation8 + $0x3e8] sm:$0xff]
    %v769 = vld [vmem:[#allocation8 + $0x3f0] sm:$0xff]
    %v770 = vld [vmem:[#allocation8 + $0x3f8] sm:$0xff]
    %v771 = vld [vmem:[#allocation8 + $0x400] sm:$0xff]
    %v772 = vld [vmem:[#allocation8 + $0x408] sm:$0xff]
    %v773 = vld [vmem:[#allocation8 + $0x410] sm:$0xff]
    %v774 = vld [vmem:[#allocation8 + $0x418] sm:$0xff]
    %v775 = vld [vmem:[#allocation8 + $0x420] sm:$0xff]
    %v776 = vld [vmem:[#allocation8 + $0x428] sm:$0xff]
    %v777 = vld [vmem:[#allocation8 + $0x430] sm:$0xff]
    %v778 = vld [vmem:[#allocation8 + $0x438] sm:$0xff]
    %v779 = vld [vmem:[#allocation8 + $0x440] sm:$0xff]
    %v780 = vld [vmem:[#allocation8 + $0x448] sm:$0xff]
    %v781 = vld [vmem:[#allocation8 + $0x450] sm:$0xff]
    %v782 = vld [vmem:[#allocation8 + $0x458] sm:$0xff]
    %v783 = vld [vmem:[#allocation8 + $0x460] sm:$0xff]
    %v784 = vld [vmem:[#allocation8 + $0x468] sm:$0xff]
    %v785 = vld [vmem:[#allocation8 + $0x470] sm:$0xff]
    %v786 = vld [vmem:[#allocation8 + $0x478] sm:$0xff]
    %v787 = vld [vmem:[#allocation8 + $0x480] sm:$0xff]
    %v788 = vld [vmem:[#allocation8 + $0x488] sm:$0xff]
    %v789 = vld [vmem:[#allocation8 + $0x490] sm:$0xff]
    %v790 = vld [vmem:[#allocation8 + $0x498] sm:$0xff]
    %v791 = vld [vmem:[#allocation8 + $0x4a0] sm:$0xff]
    %v792 = vld [vmem:[#allocation8 + $0x4a8] sm:$0xff]
    %v793 = vld [vmem:[#allocation8 + $0x4b0] sm:$0xff]
    %v794 = vld [vmem:[#allocation8 + $0x4b8] sm:$0xff]
    %v795 = vld [vmem:[#allocation8 + $0x4c0] sm:$0xff]
    %v796 = vld [vmem:[#allocation8 + $0x4c8] sm:$0xff]
    %v797 = vld [vmem:[#allocation8 + $0x4d0] sm:$0xff]
    %v798 = vld [vmem:[#allocation8 + $0x4d8] sm:$0xff]
    %v799 = vld [vmem:[#allocation8 + $0x4e0] sm:$0xff]
    %v800 = vld [vmem:[#allocation8 + $0x4e8] sm:$0xff]
    %v801 = vld [vmem:[#allocation8 + $0x4f0] sm:$0xff]
    %v802 = vld [vmem:[#allocation8 + $0x4f8] sm:$0xff]
    %v803 = vld [vmem:[#allocation8 + $0x500] sm:$0xff]
    %v804 = vld [vmem:[#allocation8 + $0x508] sm:$0xff]
    %v805 = vld [vmem:[#allocation8 + $0x510] sm:$0xff]
    %v806 = vld [vmem:[#allocation8 + $0x518] sm:$0xff]
    %v807 = vld [vmem:[#allocation8 + $0x520] sm:$0xff]
    %v808 = vld [vmem:[#allocation8 + $0x528] sm:$0xff]
    %v809 = vld [vmem:[#allocation8 + $0x530] sm:$0xff]
    %v810 = vld [vmem:[#allocation8 + $0x538] sm:$0xff]
    %v811 = vld [vmem:[#allocation8 + $0x540] sm:$0xff]
    %v812 = vld [vmem:[#allocation8 + $0x548] sm:$0xff]
    %v813 = vld [vmem:[#allocation8 + $0x550] sm:$0xff]
    %v814 = vld [vmem:[#allocation8 + $0x558] sm:$0xff]
    %v815 = vld [vmem:[#allocation8 + $0x560] sm:$0xff]
    %v816 = vld [vmem:[#allocation8 + $0x568] sm:$0xff]
    %v817 = vld [vmem:[#allocation8 + $0x570] sm:$0xff]
    %v818 = vld [vmem:[#allocation8 + $0x578] sm:$0xff]
    %v819 = vld [vmem:[#allocation8 + $0x580] sm:$0xff]
    %v820 = vld [vmem:[#allocation8 + $0x588] sm:$0xff]
    %v821 = vld [vmem:[#allocation8 + $0x590] sm:$0xff]
    %v822 = vld [vmem:[#allocation8 + $0x598] sm:$0xff]
    %v823 = vld [vmem:[#allocation8 + $0x5a0] sm:$0xff]
    %v824 = vld [vmem:[#allocation8 + $0x5a8] sm:$0xff]
    %v825 = vld [vmem:[#allocation8 + $0x5b0] sm:$0xff]
    %v826 = vld [vmem:[#allocation8 + $0x5b8] sm:$0xff]
    %v827 = vld [vmem:[#allocation8 + $0x5c0] sm:$0xff]
    %v828 = vld [vmem:[#allocation8 + $0x5c8] sm:$0xff]
    %v829 = vld [vmem:[#allocation8 + $0x5d0] sm:$0xff]
    %v830 = vld [vmem:[#allocation8 + $0x5d8] sm:$0xff]
    %v831 = vld [vmem:[#allocation8 + $0x5e0] sm:$0xff]
    %v832 = vld [vmem:[#allocation8 + $0x5e8] sm:$0xff]
    %v833 = vld [vmem:[#allocation8 + $0x5f0] sm:$0xff]
    %v834 = vld [vmem:[#allocation8 + $0x5f8] sm:$0xff]
    %v835 = vld [vmem:[%s4] sm:$0x1]
    %v837 = vlaneseq
    %v838 = vshrl.u32 %v837, 7
    %v839 = vsub.s32 0, %v838
    %v840 = vrot.slane %v835, %v839
    %842 = vmatprep.subr.mxu0 0.0
    %843 = vmatpush1.msra.mxu0 %v643
    %844 = vmatprep.subr.mxu0 0.0
    %845 = vmatpush1.msra.mxu0 %v644
    %846 = vmatprep.subr.mxu0 0.0
    %847 = vmatpush1.msra.mxu0 %v645
    %848 = vmatprep.subr.mxu0 0.0
    %849 = vmatpush1.msra.mxu0 %v646
    %850 = vmatprep.subr.mxu0 0.0
    %851 = vmatpush1.msra.mxu0 %v647
    %852 = vmatprep.subr.mxu0 0.0
    %853 = vmatpush1.msra.mxu0 %v648
    %854 = vmatprep.subr.mxu0 0.0
    %855 = vmatpush1.msra.mxu0 %v649
    %856 = vmatprep.subr.mxu0 0.0
    %857 = vmatpush1.msra.mxu0 %v650
    %858 = vmatprep.subr.mxu0 0.0
    %859 = vmatpush1.msra.mxu0 %v651
    %860 = vmatprep.subr.mxu0 0.0
    %861 = vmatpush1.msra.mxu0 %v652
    %862 = vmatprep.subr.mxu0 0.0
    %863 = vmatpush1.msra.mxu0 %v653
    %864 = vmatprep.subr.mxu0 0.0
    %865 = vmatpush1.msra.mxu0 %v654
    %866 = vmatprep.subr.mxu0 0.0
    %867 = vmatpush1.msra.mxu0 %v655
    %868 = vmatprep.subr.mxu0 0.0
    %869 = vmatpush1.msra.mxu0 %v656
    %870 = vmatprep.subr.mxu0 0.0
    %871 = vmatpush1.msra.mxu0 %v657
    %872 = vmatprep.subr.mxu0 0.0
    %873 = vmatpush1.msra.mxu0 %v658
    %874 = vmatprep.subr.mxu0 0.0
    %875 = vmatpush1.msra.mxu0 %v659
    %876 = vmatprep.subr.mxu0 0.0
    %877 = vmatpush1.msra.mxu0 %v660
    %878 = vmatprep.subr.mxu0 0.0
    %879 = vmatpush1.msra.mxu0 %v661
    %880 = vmatprep.subr.mxu0 0.0
    %881 = vmatpush1.msra.mxu0 %v662
    %882 = vmatprep.subr.mxu0 0.0
    %883 = vmatpush1.msra.mxu0 %v663
    %884 = vmatprep.subr.mxu0 0.0
    %885 = vmatpush1.msra.mxu0 %v664
    %886 = vmatprep.subr.mxu0 0.0
    %887 = vmatpush1.msra.mxu0 %v665
    %888 = vmatprep.subr.mxu0 0.0
    %889 = vmatpush1.msra.mxu0 %v666
    %890 = vmatprep.subr.mxu0 0.0
    %891 = vmatpush1.msra.mxu0 %v667
    %892 = vmatprep.subr.mxu0 0.0
    %893 = vmatpush1.msra.mxu0 %v668
    %894 = vmatprep.subr.mxu0 0.0
    %895 = vmatpush1.msra.mxu0 %v669
    %896 = vmatprep.subr.mxu0 0.0
    %897 = vmatpush1.msra.mxu0 %v670
    %898 = vmatprep.subr.mxu0 0.0
    %899 = vmatpush1.msra.mxu0 %v671
    %900 = vmatprep.subr.mxu0 0.0
    %901 = vmatpush1.msra.mxu0 %v672
    %902 = vmatprep.subr.mxu0 0.0
    %903 = vmatpush1.msra.mxu0 %v673
    %904 = vmatprep.subr.mxu0 0.0
    %905 = vmatpush1.msra.mxu0 %v674
    %906 = vmatprep.mubr.f32.mxu0 %v286
    %907 = vmatmul.mubr.f32.gmra.mrb[0].mxu0 %v284
    %v908 = vpop.f32.mrb[0].mxu0
    %v909 = vadd.f32 %v840, %v908
    %v910 = vpop.f32.mrb[0].mxu0
    %911 = vdwg.mxu0
    %912 = vmatprep.subr.mxu0 0.0
    %913 = vmatpush1.msra.mxu0 %v675
    %914 = vmatprep.subr.mxu0 0.0
    %915 = vmatpush1.msra.mxu0 %v676
    %916 = vmatprep.subr.mxu0 0.0
    %917 = vmatpush1.msra.mxu0 %v677
    %918 = vmatprep.subr.mxu0 0.0
    %919 = vmatpush1.msra.mxu0 %v678
    %920 = vmatprep.subr.mxu0 0.0
    %921 = vmatpush1.msra.mxu0 %v679
    %922 = vmatprep.subr.mxu0 0.0
    %923 = vmatpush1.msra.mxu0 %v680
    %924 = vmatprep.subr.mxu0 0.0
    %925 = vmatpush1.msra.mxu0 %v681
    %926 = vmatprep.subr.mxu0 0.0
    %927 = vmatpush1.msra.mxu0 %v682
    %928 = vmatprep.subr.mxu0 0.0
    %929 = vmatpush1.msra.mxu0 %v683
    %930 = vmatprep.subr.mxu0 0.0
    %931 = vmatpush1.msra.mxu0 %v684
    %932 = vmatprep.subr.mxu0 0.0
    %933 = vmatpush1.msra.mxu0 %v685
    %934 = vmatprep.subr.mxu0 0.0
    %935 = vmatpush1.msra.mxu0 %v686
    %936 = vmatprep.subr.mxu0 0.0
    %937 = vmatpush1.msra.mxu0 %v687
    %938 = vmatprep.subr.mxu0 0.0
    %939 = vmatpush1.msra.mxu0 %v688
    %940 = vmatprep.subr.mxu0 0.0
    %941 = vmatpush1.msra.mxu0 %v689
    %942 = vmatprep.subr.mxu0 0.0
    %943 = vmatpush1.msra.mxu0 %v690
    %944 = vmatprep.subr.mxu0 0.0
    %945 = vmatpush1.msra.mxu0 %v691
    %946 = vmatprep.subr.mxu0 0.0
    %947 = vmatpush1.msra.mxu0 %v692
    %948 = vmatprep.subr.mxu0 0.0
    %949 = vmatpush1.msra.mxu0 %v693
    %950 = vmatprep.subr.mxu0 0.0
    %951 = vmatpush1.msra.mxu0 %v694
    %952 = vmatprep.subr.mxu0 0.0
    %953 = vmatpush1.msra.mxu0 %v695
    %954 = vmatprep.subr.mxu0 0.0
    %955 = vmatpush1.msra.mxu0 %v696
    %956 = vmatprep.subr.mxu0 0.0
    %957 = vmatpush1.msra.mxu0 %v697
    %958 = vmatprep.subr.mxu0 0.0
    %959 = vmatpush1.msra.mxu0 %v698
    %960 = vmatprep.subr.mxu0 0.0
    %961 = vmatpush1.msra.mxu0 %v699
    %962 = vmatprep.subr.mxu0 0.0
    %963 = vmatpush1.msra.mxu0 %v700
    %964 = vmatprep.subr.mxu0 0.0
    %965 = vmatpush1.msra.mxu0 %v701
    %966 = vmatprep.subr.mxu0 0.0
    %967 = vmatpush1.msra.mxu0 %v702
    %968 = vmatprep.subr.mxu0 0.0
    %969 = vmatpush1.msra.mxu0 %v703
    %970 = vmatprep.subr.mxu0 0.0
    %971 = vmatpush1.msra.mxu0 %v704
    %972 = vmatprep.subr.mxu0 0.0
    %973 = vmatpush1.msra.mxu0 %v705
    %974 = vmatprep.subr.mxu0 0.0
    %975 = vmatpush1.msra.mxu0 %v706
    %976 = vmatprep.mubr.f32.mxu0 %v357
    %977 = vmatmul.mubr.f32.gmra.mrb[0].mxu0 %v355
    %v978 = vpop.f32.mrb[0].mxu0
    %v979 = vadd.f32 %v909, %v978
    %v980 = vpop.f32.mrb[0].mxu0
    %981 = vdwg.mxu0
    %982 = vmatprep.subr.mxu0 0.0
    %983 = vmatpush1.msra.mxu0 %v707
    %984 = vmatprep.subr.mxu0 0.0
    %985 = vmatpush1.msra.mxu0 %v708
    %986 = vmatprep.subr.mxu0 0.0
    %987 = vmatpush1.msra.mxu0 %v709
    %988 = vmatprep.subr.mxu0 0.0
    %989 = vmatpush1.msra.mxu0 %v710
    %990 = vmatprep.subr.mxu0 0.0
    %991 = vmatpush1.msra.mxu0 %v711
    %992 = vmatprep.subr.mxu0 0.0
    %993 = vmatpush1.msra.mxu0 %v712
    %994 = vmatprep.subr.mxu0 0.0
    %995 = vmatpush1.msra.mxu0 %v713
    %996 = vmatprep.subr.mxu0 0.0
    %997 = vmatpush1.msra.mxu0 %v714
    %998 = vmatprep.subr.mxu0 0.0
    %999 = vmatpush1.msra.mxu0 %v715
    %1000 = vmatprep.subr.mxu0 0.0
    %1001 = vmatpush1.msra.mxu0 %v716
    %1002 = vmatprep.subr.mxu0 0.0
    %1003 = vmatpush1.msra.mxu0 %v717
    %1004 = vmatprep.subr.mxu0 0.0
    %1005 = vmatpush1.msra.mxu0 %v718
    %1006 = vmatprep.subr.mxu0 0.0
    %1007 = vmatpush1.msra.mxu0 %v719
    %1008 = vmatprep.subr.mxu0 0.0
    %1009 = vmatpush1.msra.mxu0 %v720
    %1010 = vmatprep.subr.mxu0 0.0
    %1011 = vmatpush1.msra.mxu0 %v721
    %1012 = vmatprep.subr.mxu0 0.0
    %1013 = vmatpush1.msra.mxu0 %v722
    %1014 = vmatprep.subr.mxu0 0.0
    %1015 = vmatpush1.msra.mxu0 %v723
    %1016 = vmatprep.subr.mxu0 0.0
    %1017 = vmatpush1.msra.mxu0 %v724
    %1018 = vmatprep.subr.mxu0 0.0
    %1019 = vmatpush1.msra.mxu0 %v725
    %1020 = vmatprep.subr.mxu0 0.0
    %1021 = vmatpush1.msra.mxu0 %v726
    %1022 = vmatprep.subr.mxu0 0.0
    %1023 = vmatpush1.msra.mxu0 %v727
    %1024 = vmatprep.subr.mxu0 0.0
    %1025 = vmatpush1.msra.mxu0 %v728
    %1026 = vmatprep.subr.mxu0 0.0
    %1027 = vmatpush1.msra.mxu0 %v729
    %1028 = vmatprep.subr.mxu0 0.0
    %1029 = vmatpush1.msra.mxu0 %v730
    %1030 = vmatprep.subr.mxu0 0.0
    %1031 = vmatpush1.msra.mxu0 %v731
    %1032 = vmatprep.subr.mxu0 0.0
    %1033 = vmatpush1.msra.mxu0 %v732
    %1034 = vmatprep.subr.mxu0 0.0
    %1035 = vmatpush1.msra.mxu0 %v733
    %1036 = vmatprep.subr.mxu0 0.0
    %1037 = vmatpush1.msra.mxu0 %v734
    %1038 = vmatprep.subr.mxu0 0.0
    %1039 = vmatpush1.msra.mxu0 %v735
    %1040 = vmatprep.subr.mxu0 0.0
    %1041 = vmatpush1.msra.mxu0 %v736
    %1042 = vmatprep.subr.mxu0 0.0
    %1043 = vmatpush1.msra.mxu0 %v737
    %1044 = vmatprep.subr.mxu0 0.0
    %1045 = vmatpush1.msra.mxu0 %v738
    %1046 = vmatprep.mubr.f32.mxu0 %v428
    %1047 = vmatmul.mubr.f32.gmra.mrb[0].mxu0 %v426
    %v1048 = vpop.f32.mrb[0].mxu0
    %v1049 = vadd.f32 %v979, %v1048
    %v1050 = vpop.f32.mrb[0].mxu0
    %1051 = vdwg.mxu0
    %1052 = vmatprep.subr.mxu0 0.0
    %1053 = vmatpush1.msra.mxu0 %v739
    %1054 = vmatprep.subr.mxu0 0.0
    %1055 = vmatpush1.msra.mxu0 %v740
    %1056 = vmatprep.subr.mxu0 0.0
    %1057 = vmatpush1.msra.mxu0 %v741
    %1058 = vmatprep.subr.mxu0 0.0
    %1059 = vmatpush1.msra.mxu0 %v742
    %1060 = vmatprep.subr.mxu0 0.0
    %1061 = vmatpush1.msra.mxu0 %v743
    %1062 = vmatprep.subr.mxu0 0.0
    %1063 = vmatpush1.msra.mxu0 %v744
    %1064 = vmatprep.subr.mxu0 0.0
    %1065 = vmatpush1.msra.mxu0 %v745
    %1066 = vmatprep.subr.mxu0 0.0
    %1067 = vmatpush1.msra.mxu0 %v746
    %1068 = vmatprep.subr.mxu0 0.0
    %1069 = vmatpush1.msra.mxu0 %v747
    %1070 = vmatprep.subr.mxu0 0.0
    %1071 = vmatpush1.msra.mxu0 %v748
    %1072 = vmatprep.subr.mxu0 0.0
    %1073 = vmatpush1.msra.mxu0 %v749
    %1074 = vmatprep.subr.mxu0 0.0
    %1075 = vmatpush1.msra.mxu0 %v750
    %1076 = vmatprep.subr.mxu0 0.0
    %1077 = vmatpush1.msra.mxu0 %v751
    %1078 = vmatprep.subr.mxu0 0.0
    %1079 = vmatpush1.msra.mxu0 %v752
    %1080 = vmatprep.subr.mxu0 0.0
    %1081 = vmatpush1.msra.mxu0 %v753
    %1082 = vmatprep.subr.mxu0 0.0
    %1083 = vmatpush1.msra.mxu0 %v754
    %1084 = vmatprep.subr.mxu0 0.0
    %1085 = vmatpush1.msra.mxu0 %v755
    %1086 = vmatprep.subr.mxu0 0.0
    %1087 = vmatpush1.msra.mxu0 %v756
    %1088 = vmatprep.subr.mxu0 0.0
    %1089 = vmatpush1.msra.mxu0 %v757
    %1090 = vmatprep.subr.mxu0 0.0
    %1091 = vmatpush1.msra.mxu0 %v758
    %1092 = vmatprep.subr.mxu0 0.0
    %1093 = vmatpush1.msra.mxu0 %v759
    %1094 = vmatprep.subr.mxu0 0.0
    %1095 = vmatpush1.msra.mxu0 %v760
    %1096 = vmatprep.subr.mxu0 0.0
    %1097 = vmatpush1.msra.mxu0 %v761
    %1098 = vmatprep.subr.mxu0 0.0
    %1099 = vmatpush1.msra.mxu0 %v762
    %1100 = vmatprep.subr.mxu0 0.0
    %1101 = vmatpush1.msra.mxu0 %v763
    %1102 = vmatprep.subr.mxu0 0.0
    %1103 = vmatpush1.msra.mxu0 %v764
    %1104 = vmatprep.subr.mxu0 0.0
    %1105 = vmatpush1.msra.mxu0 %v765
    %1106 = vmatprep.subr.mxu0 0.0
    %1107 = vmatpush1.msra.mxu0 %v766
    %1108 = vmatprep.subr.mxu0 0.0
    %1109 = vmatpush1.msra.mxu0 %v767
    %1110 = vmatprep.subr.mxu0 0.0
    %1111 = vmatpush1.msra.mxu0 %v768
    %1112 = vmatprep.subr.mxu0 0.0
    %1113 = vmatpush1.msra.mxu0 %v769
    %1114 = vmatprep.subr.mxu0 0.0
    %1115 = vmatpush1.msra.mxu0 %v770
    %1116 = vmatprep.mubr.f32.mxu0 %v499
    %1117 = vmatmul.mubr.f32.gmra.mrb[0].mxu0 %v497
    %v1118 = vpop.f32.mrb[0].mxu0
    %v1119 = vadd.f32 %v1049, %v1118
    %v1120 = vpop.f32.mrb[0].mxu0
    %1121 = vdwg.mxu0
    %1122 = vmatprep.subr.mxu0 0.0
    %1123 = vmatpush1.msra.mxu0 %v771
    %1124 = vmatprep.subr.mxu0 0.0
    %1125 = vmatpush1.msra.mxu0 %v772
    %1126 = vmatprep.subr.mxu0 0.0
    %1127 = vmatpush1.msra.mxu0 %v773
    %1128 = vmatprep.subr.mxu0 0.0
    %1129 = vmatpush1.msra.mxu0 %v774
    %1130 = vmatprep.subr.mxu0 0.0
    %1131 = vmatpush1.msra.mxu0 %v775
    %1132 = vmatprep.subr.mxu0 0.0
    %1133 = vmatpush1.msra.mxu0 %v776
    %1134 = vmatprep.subr.mxu0 0.0
    %1135 = vmatpush1.msra.mxu0 %v777
    %1136 = vmatprep.subr.mxu0 0.0
    %1137 = vmatpush1.msra.mxu0 %v778
    %1138 = vmatprep.subr.mxu0 0.0
    %1139 = vmatpush1.msra.mxu0 %v779
    %1140 = vmatprep.subr.mxu0 0.0
    %1141 = vmatpush1.msra.mxu0 %v780
    %1142 = vmatprep.subr.mxu0 0.0
    %1143 = vmatpush1.msra.mxu0 %v781
    %1144 = vmatprep.subr.mxu0 0.0
    %1145 = vmatpush1.msra.mxu0 %v782
    %1146 = vmatprep.subr.mxu0 0.0
    %1147 = vmatpush1.msra.mxu0 %v783
    %1148 = vmatprep.subr.mxu0 0.0
    %1149 = vmatpush1.msra.mxu0 %v784
    %1150 = vmatprep.subr.mxu0 0.0
    %1151 = vmatpush1.msra.mxu0 %v785
    %1152 = vmatprep.subr.mxu0 0.0
    %1153 = vmatpush1.msra.mxu0 %v786
    %1154 = vmatprep.subr.mxu0 0.0
    %1155 = vmatpush1.msra.mxu0 %v787
    %1156 = vmatprep.subr.mxu0 0.0
    %1157 = vmatpush1.msra.mxu0 %v788
    %1158 = vmatprep.subr.mxu0 0.0
    %1159 = vmatpush1.msra.mxu0 %v789
    %1160 = vmatprep.subr.mxu0 0.0
    %1161 = vmatpush1.msra.mxu0 %v790
    %1162 = vmatprep.subr.mxu0 0.0
    %1163 = vmatpush1.msra.mxu0 %v791
    %1164 = vmatprep.subr.mxu0 0.0
    %1165 = vmatpush1.msra.mxu0 %v792
    %1166 = vmatprep.subr.mxu0 0.0
    %1167 = vmatpush1.msra.mxu0 %v793
    %1168 = vmatprep.subr.mxu0 0.0
    %1169 = vmatpush1.msra.mxu0 %v794
    %1170 = vmatprep.subr.mxu0 0.0
    %1171 = vmatpush1.msra.mxu0 %v795
    %1172 = vmatprep.subr.mxu0 0.0
    %1173 = vmatpush1.msra.mxu0 %v796
    %1174 = vmatprep.subr.mxu0 0.0
    %1175 = vmatpush1.msra.mxu0 %v797
    %1176 = vmatprep.subr.mxu0 0.0
    %1177 = vmatpush1.msra.mxu0 %v798
    %1178 = vmatprep.subr.mxu0 0.0
    %1179 = vmatpush1.msra.mxu0 %v799
    %1180 = vmatprep.subr.mxu0 0.0
    %1181 = vmatpush1.msra.mxu0 %v800
    %1182 = vmatprep.subr.mxu0 0.0
    %1183 = vmatpush1.msra.mxu0 %v801
    %1184 = vmatprep.subr.mxu0 0.0
    %1185 = vmatpush1.msra.mxu0 %v802
    %1186 = vmatprep.mubr.f32.mxu0 %v570
    %1187 = vmatmul.mubr.f32.gmra.mrb[0].mxu0 %v568
    %v1188 = vpop.f32.mrb[0].mxu0
    %v1189 = vadd.f32 %v1119, %v1188
    %v1190 = vpop.f32.mrb[0].mxu0
    %1191 = vdwg.mxu0
    %1192 = vmatprep.subr.mxu0 0.0
    %1193 = vmatpush1.msra.mxu0 %v803
    %1194 = vmatprep.subr.mxu0 0.0
    %1195 = vmatpush1.msra.mxu0 %v804
    %1196 = vmatprep.subr.mxu0 0.0
    %1197 = vmatpush1.msra.mxu0 %v805
    %1198 = vmatprep.subr.mxu0 0.0
    %1199 = vmatpush1.msra.mxu0 %v806
    %1200 = vmatprep.subr.mxu0 0.0
    %1201 = vmatpush1.msra.mxu0 %v807
    %1202 = vmatprep.subr.mxu0 0.0
    %1203 = vmatpush1.msra.mxu0 %v808
    %1204 = vmatprep.subr.mxu0 0.0
    %1205 = vmatpush1.msra.mxu0 %v809
    %1206 = vmatprep.subr.mxu0 0.0
    %1207 = vmatpush1.msra.mxu0 %v810
    %1208 = vmatprep.subr.mxu0 0.0
    %1209 = vmatpush1.msra.mxu0 %v811
    %1210 = vmatprep.subr.mxu0 0.0
    %1211 = vmatpush1.msra.mxu0 %v812
    %1212 = vmatprep.subr.mxu0 0.0
    %1213 = vmatpush1.msra.mxu0 %v813
    %1214 = vmatprep.subr.mxu0 0.0
    %1215 = vmatpush1.msra.mxu0 %v814
    %1216 = vmatprep.subr.mxu0 0.0
    %1217 = vmatpush1.msra.mxu0 %v815
    %1218 = vmatprep.subr.mxu0 0.0
    %1219 = vmatpush1.msra.mxu0 %v816
    %1220 = vmatprep.subr.mxu0 0.0
    %1221 = vmatpush1.msra.mxu0 %v817
    %1222 = vmatprep.subr.mxu0 0.0
    %1223 = vmatpush1.msra.mxu0 %v818
    %1224 = vmatprep.subr.mxu0 0.0
    %1225 = vmatpush1.msra.mxu0 %v819
    %1226 = vmatprep.subr.mxu0 0.0
    %1227 = vmatpush1.msra.mxu0 %v820
    %1228 = vmatprep.subr.mxu0 0.0
    %1229 = vmatpush1.msra.mxu0 %v821
    %1230 = vmatprep.subr.mxu0 0.0
    %1231 = vmatpush1.msra.mxu0 %v822
    %1232 = vmatprep.subr.mxu0 0.0
    %1233 = vmatpush1.msra.mxu0 %v823
    %1234 = vmatprep.subr.mxu0 0.0
    %1235 = vmatpush1.msra.mxu0 %v824
    %1236 = vmatprep.subr.mxu0 0.0
    %1237 = vmatpush1.msra.mxu0 %v825
    %1238 = vmatprep.subr.mxu0 0.0
    %1239 = vmatpush1.msra.mxu0 %v826
    %1240 = vmatprep.subr.mxu0 0.0
    %1241 = vmatpush1.msra.mxu0 %v827
    %1242 = vmatprep.subr.mxu0 0.0
    %1243 = vmatpush1.msra.mxu0 %v828
    %1244 = vmatprep.subr.mxu0 0.0
    %1245 = vmatpush1.msra.mxu0 %v829
    %1246 = vmatprep.subr.mxu0 0.0
    %1247 = vmatpush1.msra.mxu0 %v830
    %1248 = vmatprep.subr.mxu0 0.0
    %1249 = vmatpush1.msra.mxu0 %v831
    %1250 = vmatprep.subr.mxu0 0.0
    %1251 = vmatpush1.msra.mxu0 %v832
    %1252 = vmatprep.subr.mxu0 0.0
    %1253 = vmatpush1.msra.mxu0 %v833
    %1254 = vmatprep.subr.mxu0 0.0
    %1255 = vmatpush1.msra.mxu0 %v834
    %1256 = vmatprep.mubr.f32.mxu0 %v641
    %1257 = vmatmul.mubr.f32.gmra.mrb[0].mxu0 %v639
    %v1258 = vpop.f32.mrb[0].mxu0
    %v1259 = vadd.f32 %v1189, %v1258
    %v1260 = vpop.f32.mrb[0].mxu0
    %1261 = vdwg.mxu0
    %1262 = vst [vmem:[#allocation10] sm:$0x3] %v1259
    // Predicated region
    $region38: #{tpu_custom_call.1} parent=1 // pred_check
      _
    $region39: #{tpu_custom_call.1} parent=1 // pred_check_branch
      %1264 = sbr.rel (0) target = $region41
    $region40: #{tpu_custom_call.1} parent=1 // pred_region
      %s1266 = ssub.s32 32, 32
      %1267 = vsyncadd [#allocation4], %s1266
      %s1269 = sshll.u32 [#allocation10], 4
      %s1270 = int_to_ptr.vmem [resolvable:$true] %s1269
      %1272 = dma.vmem_to_hbm [thread:$0]  %s1270, 32, %s5, [#allocation4]
    $region41: #{tpu_custom_call.1} parent=1 // pred_fallthru
      _
    // Predicated region
    $region42: #{tpu_custom_call.1} parent=1 // pred_check
      _
    $region43: #{tpu_custom_call.1} parent=1 // pred_check_branch
      %1274 = sbr.rel (0) target = $region45
    $region44: #{tpu_custom_call.1} parent=1 // pred_region
      %1275 = dma.done [#allocation4], 32
    $region45: #{tpu_custom_call.1} parent=1 // pred_fallthru
      _
    %1276 = vsyncpa [#allocation3], 1
    %1277 = vsyncpa [#allocation6], 1
    %1278 = vsyncpa [#allocation9], 1
    %1279 = vsyncpa [#allocation4], 1

</llo_original>
